<compile_context>
chip_gen: v7x
topology: tpu7x:2x2x1
jax: 0.10.0
libtpu: 0.0.40
codegen_flags: <defaults>
</compile_context>

<pallas_src>
import math
from functools import partial

import jax
import jax.numpy as jnp
import numpy as np
from jax import lax
from jax.experimental import pallas as pl
from jax.experimental.pallas import tpu as pltpu


# ----------------------------- padding helpers ------------------------------
def get_padding_shape(filter_shape, stride):
    def _pad_top_bottom(filter_dim, stride_val):
        pad_along = max(filter_dim - stride_val, 0)
        pad_top = pad_along // 2
        pad_bottom = pad_along - pad_top
        return (pad_top, pad_bottom)

    padding_shape = []
    for filter_dim, stride_val in zip(filter_shape, stride):
        pad_top, pad_bottom = _pad_top_bottom(filter_dim, stride_val)
        padding_shape.append(pad_top)
        padding_shape.append(pad_bottom)
    depth_top = padding_shape.pop(0)
    depth_bottom = padding_shape.pop(0)
    padding_shape.append(depth_top)
    padding_shape.append(depth_bottom)
    return tuple(padding_shape)  # (h_t, h_b, w_t, w_b, d_t, d_b)


# ------------------------------- Pallas kernel -------------------------------
def conv3d_bn_act_kernel(x_ref, w_ref, scale_ref, shift_ref, o_ref, acc_ref,
                         *, kh, kw, Wp, S, apply_relu):
    """One grid step = one (batch, out-depth, cout-tile) plane for one D-tap.

    x_ref     : (1, 1, Cin, Q)        one padded input depth-slice, spatial on lanes
    w_ref     : (1, kh*kw, tco, Cin)  weight taps for this depth-tap
    scale_ref : (tco, 1)              folded BN scale (eval mode)
    shift_ref : (tco, 1)              folded BN shift (+ optional conv bias)
    o_ref     : (1, 1, tco, S)        output plane, spatial (lane-dense) on lanes
    acc_ref   : (tco, S) f32 scratch, resident across the depth-tap grid axis
    """
    it = pl.program_id(3)

    @pl.when(it == 0)
    def _init():
        acc_ref[...] = jnp.zeros_like(acc_ref)

    acc = acc_ref[...]
    # kh*kw in-plane taps: lane-shifted windows of the flattened (H, W) plane.
    for ih in range(kh):
        for iw in range(kw):
            off = ih * Wp + iw
            xs = x_ref[0, 0, :, off:off + S]          # (Cin, S)
            wt = w_ref[0, ih * kw + iw]               # (tco, Cin)
            acc = acc + jnp.dot(wt, xs, preferred_element_type=jnp.float32)
    acc_ref[...] = acc

    @pl.when(it == pl.num_programs(3) - 1)
    def _finalize():
        out = acc_ref[...] * scale_ref[...] + shift_ref[...]
        if apply_relu:
            out = jnp.maximum(out, 0.0)
        o_ref[0, 0] = out.astype(o_ref.dtype)


def fused_conv3d_bn_act(x_flat, w_taps, scale, shift, *, kt, kh, kw, Wp, Ho,
                        apply_relu, cout_tile=128):
    """x_flat: (N, Dp, Cin, Q); w_taps: (kt, kh*kw, Cout, Cin);
    scale/shift: (Cout, 1).  Returns (N, Do, Cout, Ho*Wp) float32."""
    N, Dp, Cin, Q = x_flat.shape
    _, KHW, Cout, _ = w_taps.shape
    Do = Dp - kt + 1
    S = Ho * Wp
    tco = Cout if Cout <= cout_tile else cout_tile
    n_co = pl.cdiv(Cout, tco)

    kernel = partial(conv3d_bn_act_kernel, kh=kh, kw=kw, Wp=Wp, S=S,
                     apply_relu=apply_relu)

    return pl.pallas_call(
        kernel,
        out_shape=jax.ShapeDtypeStruct((N, Do, Cout, S), jnp.float32),
        grid_spec=pltpu.PrefetchScalarGridSpec(
            num_scalar_prefetch=0,
            grid=(N, Do, n_co, kt),
            in_specs=[
                # depth-slice for tap `it` of output depth `d`
                pl.BlockSpec((1, 1, Cin, Q),
                             lambda n, d, co, it: (n, d + it, 0, 0)),
                # weight taps for depth-tap `it`, cout-tile `co`
                # (small + constant across (n, d): candidate for pl.Buffered(1))
                pl.BlockSpec((1, KHW, tco, Cin),
                             lambda n, d, co, it: (it, 0, co, 0)),
                pl.BlockSpec((tco, 1), lambda n, d, co, it: (co, 0)),
                pl.BlockSpec((tco, 1), lambda n, d, co, it: (co, 0)),
            ],
            out_specs=pl.BlockSpec((1, 1, tco, S),
                                   lambda n, d, co, it: (n, d, co, 0)),
            scratch_shapes=[pltpu.VMEM((tco, S), jnp.float32)],
        ),
        compiler_params=pltpu.CompilerParams(
            dimension_semantics=("parallel", "parallel", "parallel", "arbitrary"),
            # stay below the v7x 64 MiB VMEM budget even at production shapes
            vmem_limit_bytes=48 * 1024 * 1024,
        ),
    )(x_flat, w_taps, scale, shift)


# ------------------------------ module wrapper -------------------------------
class Unit3DpyPallas:
    """Pallas/JAX equivalent of Unit3Dpy: Conv3d -> BatchNorm3d(eval) -> ReLU."""

    def __init__(self, in_channels, out_channels, kernel_size=(1, 1, 1),
                 stride=(1, 1, 1), activation='relu', padding='SAME',
                 use_bias=False, use_bn=True, key=None):
        if padding not in ('SAME', 'VALID'):
            raise ValueError(
                'padding should be in [VALID|SAME] but got {}'.format(padding))
        # TODO(synk): general strides (stride != 1) not implemented in this kernel.
        assert tuple(stride) == (1, 1, 1), "stride (1,1,1) only"
        self.kernel_size = tuple(kernel_size)
        self.stride = tuple(stride)
        self.use_bn = use_bn
        self.use_bias = use_bias
        self.apply_relu = (activation == 'relu')
        if padding == 'SAME':
            self.padding_shape = get_padding_shape(kernel_size, stride)
        else:
            self.padding_shape = (0, 0, 0, 0, 0, 0)

        key = key if key is not None else jax.random.PRNGKey(0)
        kt, kh, kw = self.kernel_size
        fan_in = in_channels * kt * kh * kw
        bound = 1.0 / math.sqrt(fan_in)
        # PyTorch OIDHW layout: (Cout, Cin, kt, kh, kw)
        self.weight = jax.random.uniform(
            key, (out_channels, in_channels, kt, kh, kw),
            dtype=jnp.float32, minval=-bound, maxval=bound)
        self.bias = jnp.zeros((out_channels,), jnp.float32)

        # BatchNorm3d default params / running stats (eval-mode semantics)
        self.bn_gamma = jnp.ones((out_channels,), jnp.float32)
        self.bn_beta = jnp.zeros((out_channels,), jnp.float32)
        self.bn_mean = jnp.zeros((out_channels,), jnp.float32)
        self.bn_var = jnp.ones((out_channels,), jnp.float32)
        self.bn_eps = 1e-5

    def __call__(self, x):
        # x: NCDHW
        N, Cin, D, H, W = x.shape
        kt, kh, kw = self.kernel_size
        h_t, h_b, w_t, w_b, d_t, d_b = self.padding_shape
        Dp, Hp, Wp = D + d_t + d_b, H + h_t + h_b, W + w_t + w_b
        Do, Ho, Wo = Dp - kt + 1, Hp - kh + 1, Wp - kw + 1

        # Single cheap re-layout: (N, Dp, Cin, Hp*Wp + kw-1).  No im2col.
        xt = jnp.transpose(x, (0, 2, 1, 3, 4))                 # (N, D, Cin, H, W)
        x_pad = jnp.pad(xt, ((0, 0), (d_t, d_b), (0, 0), (h_t, h_b), (w_t, w_b)))
        x_flat = x_pad.reshape(N, Dp, Cin, Hp * Wp)
        if kw > 1:   # lane guard so every tap window of length Ho*Wp is in-bounds
            x_flat = jnp.pad(x_flat, ((0, 0), (0, 0), (0, 0), (0, kw - 1)))

        # weight (Cout, Cin, kt, kh, kw) -> (kt, kh*kw, Cout, Cin)
        Cout = self.weight.shape[0]
        w_taps = jnp.transpose(self.weight, (2, 3, 4, 0, 1)).reshape(
            kt, kh * kw, Cout, Cin)

        # fold eval-mode BN (+ optional conv bias) into per-channel scale/shift
        bias = self.bias if self.use_bias else jnp.zeros((Cout,), jnp.float32)
        if self.use_bn:
            scale = self.bn_gamma / jnp.sqrt(self.bn_var + self.bn_eps)
            shift = self.bn_beta + scale * (bias - self.bn_mean)
        else:
            scale = jnp.ones((Cout,), jnp.float32)
            shift = bias
        scale = scale.reshape(Cout, 1).astype(jnp.float32)
        shift = shift.reshape(Cout, 1).astype(jnp.float32)

        out = fused_conv3d_bn_act(
            x_flat, w_taps, scale, shift, kt=kt, kh=kh, kw=kw, Wp=Wp, Ho=Ho,
            apply_relu=self.apply_relu)
        # (N, Do, Cout, Ho*Wp) -> (N, Cout, Do, Ho, Wo)  (NCDHW)
        out = out.reshape(N, Do, Cout, Ho, Wp)[..., :Wo]
        return jnp.transpose(out, (0, 2, 1, 3, 4))

    # plain-JAX reference for validation
    def reference(self, x):
        h_t, h_b, w_t, w_b, d_t, d_b = self.padding_shape
        out = lax.conv_general_dilated(
            x, self.weight, window_strides=self.stride,
            padding=((d_t, d_b), (h_t, h_b), (w_t, w_b)),
            dimension_numbers=('NCDHW', 'OIDHW', 'NCDHW'))
        if self.use_bias:
            out = out + self.bias[None, :, None, None, None]
        if self.use_bn:
            scale = self.bn_gamma / jnp.sqrt(self.bn_var + self.bn_eps)
            shift = self.bn_beta - self.bn_mean * scale
            out = out * scale[None, :, None, None, None] + \
                shift[None, :, None, None, None]
        if self.apply_relu:
            out = jnp.maximum(out, 0.0)
        return out


# ----------------------------------- main ------------------------------------
if __name__ == "__main__":
    key = jax.random.PRNGKey(0)
    k_x, k_w = jax.random.split(key)

    N, Cin, D, H, W = 2, 4, 4, 8, 8
    Cout = 8
    x = jax.random.normal(k_x, (N, Cin, D, H, W), dtype=jnp.float32)

    mod = Unit3DpyPallas(Cin, Cout, kernel_size=(3, 3, 3), stride=(1, 1, 1),
                         padding='SAME', use_bias=False, use_bn=True, key=k_w)

    fwd = jax.jit(mod.__call__)
    out = jax.block_until_ready(fwd(x))

    ref = jax.block_until_ready(mod.reference(x))
    assert out.shape == (N, Cout, D, H, W), out.shape
    np.testing.assert_allclose(np.asarray(out), np.asarray(ref),
                               rtol=1e-4, atol=1e-4)

    print("KERNEL_OK")
</pallas_src>

<mosaic_0001>
module attributes {stable_mosaic.version = 11 : i64} {
  func.func @conv3d_bn_act_kernel(%arg0: i32, %arg1: i32, %arg2: i32, %arg3: i32, %arg4: memref<1x1x4x102xf32, #tpu.memory_space<vmem>>, %arg5: memref<1x9x8x4xf32, #tpu.memory_space<vmem>>, %arg6: memref<8x1xf32, #tpu.memory_space<vmem>>, %arg7: memref<8x1xf32, #tpu.memory_space<vmem>>, %arg8: memref<1x1x8x80xf32, #tpu.memory_space<vmem>>, %arg9: memref<8x80xf32, #tpu.memory_space<vmem>>) attributes {dimension_semantics = [#tpu.dimension_semantics<parallel>, #tpu.dimension_semantics<parallel>, #tpu.dimension_semantics<parallel>, #tpu.dimension_semantics<arbitrary>], iteration_bounds = array<i64: 2, 4, 1, 3>, scalar_prefetch = 0 : i64, scratch_operands = 1 : i64, tpu.core_type = #tpu.core_type<tc>, window_params = [{transform_indices = @transform_0, window_bounds = array<i64: 1, 1, 4, 102>}, {transform_indices = @transform_1, window_bounds = array<i64: 1, 9, 8, 4>}, {transform_indices = @transform_2, window_bounds = array<i64: 8, 1>}, {transform_indices = @transform_3, window_bounds = array<i64: 8, 1>}, {transform_indices = @transform_4, window_bounds = array<i64: 1, 1, 8, 80>}]} {
    %c0_i32 = arith.constant 0 : i32
    %0 = arith.cmpi eq, %arg3, %c0_i32 : i32
    %1 = arith.extui %0 : i1 to i32
    %c0_i32_0 = arith.constant 0 : i32
    %2 = arith.cmpi ne, %1, %c0_i32_0 : i32
    scf.if %2 {
      %cst_71 = arith.constant 0.000000e+00 : f32
      %62 = vector.broadcast %cst_71 : f32 to vector<8x80xf32>
      %c0_72 = arith.constant 0 : index
      %c0_73 = arith.constant 0 : index
      %63 = vector.load %arg9[%c0_72, %c0_73] : memref<8x80xf32, #tpu.memory_space<vmem>>, vector<8x80xf32>
      tpu.vector_store %arg9[%c0_72, %c0_73], %62 {strides = array<i32>} : memref<8x80xf32, #tpu.memory_space<vmem>>, vector<8x80xf32>,
    } else {
    }
    %c0 = arith.constant 0 : index
    %c0_1 = arith.constant 0 : index
    %3 = vector.load %arg9[%c0, %c0_1] : memref<8x80xf32, #tpu.memory_space<vmem>>, vector<8x80xf32>
    %c0_2 = arith.constant 0 : index
    %c0_3 = arith.constant 0 : index
    %c0_4 = arith.constant 0 : index
    %c0_5 = arith.constant 0 : index
    %4 = vector.load %arg4[%c0_2, %c0_3, %c0_4, %c0_5] : memref<1x1x4x102xf32, #tpu.memory_space<vmem>>, vector<1x1x4x80xf32>
    %5 = vector.shape_cast %4 : vector<1x1x4x80xf32> to vector<4x80xf32>
    %c0_6 = arith.constant 0 : index
    %c0_7 = arith.constant 0 : index
    %c0_8 = arith.constant 0 : index
    %c0_9 = arith.constant 0 : index
    %6 = vector.load %arg5[%c0_6, %c0_7, %c0_8, %c0_9] : memref<1x9x8x4xf32, #tpu.memory_space<vmem>>, vector<1x1x8x4xf32>
    %7 = vector.shape_cast %6 : vector<1x1x8x4xf32> to vector<8x4xf32>
    %cst = arith.constant dense<0.000000e+00> : vector<8x80xf32>
    %8 = tpu.matmul %7, %5, %cst {dimension_numbers = #tpu.dot_dimension_numbers<[1], [0], [0], [1], [0, 0, 1, 1], [], []>} : vector<8x4xf32>, vector<4x80xf32>, vector<8x80xf32> -> vector<8x80xf32>
    %9 = arith.addf %3, %8 : vector<8x80xf32>
    %c0_10 = arith.constant 0 : index
    %c0_11 = arith.constant 0 : index
    %c0_12 = arith.constant 0 : index
    %c1 = arith.constant 1 : index
    %10 = vector.load %arg4[%c0_10, %c0_11, %c0_12, %c1] : memref<1x1x4x102xf32, #tpu.memory_space<vmem>>, vector<1x1x4x80xf32>
    %11 = vector.shape_cast %10 : vector<1x1x4x80xf32> to vector<4x80xf32>
    %c0_13 = arith.constant 0 : index
    %c1_14 = arith.constant 1 : index
    %c0_15 = arith.constant 0 : index
    %c0_16 = arith.constant 0 : index
    %12 = vector.load %arg5[%c0_13, %c1_14, %c0_15, %c0_16] : memref<1x9x8x4xf32, #tpu.memory_space<vmem>>, vector<1x1x8x4xf32>
    %13 = vector.shape_cast %12 : vector<1x1x8x4xf32> to vector<8x4xf32>
    %cst_17 = arith.constant dense<0.000000e+00> : vector<8x80xf32>
    %14 = tpu.matmul %13, %11, %cst_17 {dimension_numbers = #tpu.dot_dimension_numbers<[1], [0], [0], [1], [0, 0, 1, 1], [], []>} : vector<8x4xf32>, vector<4x80xf32>, vector<8x80xf32> -> vector<8x80xf32>
    %15 = arith.addf %9, %14 : vector<8x80xf32>
    %c0_18 = arith.constant 0 : index
    %c0_19 = arith.constant 0 : index
    %c0_20 = arith.constant 0 : index
    %c2 = arith.constant 2 : index
    %16 = vector.load %arg4[%c0_18, %c0_19, %c0_20, %c2] : memref<1x1x4x102xf32, #tpu.memory_space<vmem>>, vector<1x1x4x80xf32>
    %17 = vector.shape_cast %16 : vector<1x1x4x80xf32> to vector<4x80xf32>
    %c0_21 = arith.constant 0 : index
    %c2_22 = arith.constant 2 : index
    %c0_23 = arith.constant 0 : index
    %c0_24 = arith.constant 0 : index
    %18 = vector.load %arg5[%c0_21, %c2_22, %c0_23, %c0_24] : memref<1x9x8x4xf32, #tpu.memory_space<vmem>>, vector<1x1x8x4xf32>
    %19 = vector.shape_cast %18 : vector<1x1x8x4xf32> to vector<8x4xf32>
    %cst_25 = arith.constant dense<0.000000e+00> : vector<8x80xf32>
    %20 = tpu.matmul %19, %17, %cst_25 {dimension_numbers = #tpu.dot_dimension_numbers<[1], [0], [0], [1], [0, 0, 1, 1], [], []>} : vector<8x4xf32>, vector<4x80xf32>, vector<8x80xf32> -> vector<8x80xf32>
    %21 = arith.addf %15, %20 : vector<8x80xf32>
    %c0_26 = arith.constant 0 : index
    %c0_27 = arith.constant 0 : index
    %c0_28 = arith.constant 0 : index
    %c10 = arith.constant 10 : index
    %22 = vector.load %arg4[%c0_26, %c0_27, %c0_28, %c10] : memref<1x1x4x102xf32, #tpu.memory_space<vmem>>, vector<1x1x4x80xf32>
    %23 = vector.shape_cast %22 : vector<1x1x4x80xf32> to vector<4x80xf32>
    %c0_29 = arith.constant 0 : index
    %c3 = arith.constant 3 : index
    %c0_30 = arith.constant 0 : index
    %c0_31 = arith.constant 0 : index
    %24 = vector.load %arg5[%c0_29, %c3, %c0_30, %c0_31] : memref<1x9x8x4xf32, #tpu.memory_space<vmem>>, vector<1x1x8x4xf32>
    %25 = vector.shape_cast %24 : vector<1x1x8x4xf32> to vector<8x4xf32>
    %cst_32 = arith.constant dense<0.000000e+00> : vector<8x80xf32>
    %26 = tpu.matmul %25, %23, %cst_32 {dimension_numbers = #tpu.dot_dimension_numbers<[1], [0], [0], [1], [0, 0, 1, 1], [], []>} : vector<8x4xf32>, vector<4x80xf32>, vector<8x80xf32> -> vector<8x80xf32>
    %27 = arith.addf %21, %26 : vector<8x80xf32>
    %c0_33 = arith.constant 0 : index
    %c0_34 = arith.constant 0 : index
    %c0_35 = arith.constant 0 : index
    %c11 = arith.constant 11 : index
    %28 = vector.load %arg4[%c0_33, %c0_34, %c0_35, %c11] : memref<1x1x4x102xf32, #tpu.memory_space<vmem>>, vector<1x1x4x80xf32>
    %29 = vector.shape_cast %28 : vector<1x1x4x80xf32> to vector<4x80xf32>
    %c0_36 = arith.constant 0 : index
    %c4 = arith.constant 4 : index
    %c0_37 = arith.constant 0 : index
    %c0_38 = arith.constant 0 : index
    %30 = vector.load %arg5[%c0_36, %c4, %c0_37, %c0_38] : memref<1x9x8x4xf32, #tpu.memory_space<vmem>>, vector<1x1x8x4xf32>
    %31 = vector.shape_cast %30 : vector<1x1x8x4xf32> to vector<8x4xf32>
    %cst_39 = arith.constant dense<0.000000e+00> : vector<8x80xf32>
    %32 = tpu.matmul %31, %29, %cst_39 {dimension_numbers = #tpu.dot_dimension_numbers<[1], [0], [0], [1], [0, 0, 1, 1], [], []>} : vector<8x4xf32>, vector<4x80xf32>, vector<8x80xf32> -> vector<8x80xf32>
    %33 = arith.addf %27, %32 : vector<8x80xf32>
    %c0_40 = arith.constant 0 : index
    %c0_41 = arith.constant 0 : index
    %c0_42 = arith.constant 0 : index
    %c12 = arith.constant 12 : index
    %34 = vector.load %arg4[%c0_40, %c0_41, %c0_42, %c12] : memref<1x1x4x102xf32, #tpu.memory_space<vmem>>, vector<1x1x4x80xf32>
    %35 = vector.shape_cast %34 : vector<1x1x4x80xf32> to vector<4x80xf32>
    %c0_43 = arith.constant 0 : index
    %c5 = arith.constant 5 : index
    %c0_44 = arith.constant 0 : index
    %c0_45 = arith.constant 0 : index
    %36 = vector.load %arg5[%c0_43, %c5, %c0_44, %c0_45] : memref<1x9x8x4xf32, #tpu.memory_space<vmem>>, vector<1x1x8x4xf32>
    %37 = vector.shape_cast %36 : vector<1x1x8x4xf32> to vector<8x4xf32>
    %cst_46 = arith.constant dense<0.000000e+00> : vector<8x80xf32>
    %38 = tpu.matmul %37, %35, %cst_46 {dimension_numbers = #tpu.dot_dimension_numbers<[1], [0], [0], [1], [0, 0, 1, 1], [], []>} : vector<8x4xf32>, vector<4x80xf32>, vector<8x80xf32> -> vector<8x80xf32>
    %39 = arith.addf %33, %38 : vector<8x80xf32>
    %c0_47 = arith.constant 0 : index
    %c0_48 = arith.constant 0 : index
    %c0_49 = arith.constant 0 : index
    %c20 = arith.constant 20 : index
    %40 = vector.load %arg4[%c0_47, %c0_48, %c0_49, %c20] : memref<1x1x4x102xf32, #tpu.memory_space<vmem>>, vector<1x1x4x80xf32>
    %41 = vector.shape_cast %40 : vector<1x1x4x80xf32> to vector<4x80xf32>
    %c0_50 = arith.constant 0 : index
    %c6 = arith.constant 6 : index
    %c0_51 = arith.constant 0 : index
    %c0_52 = arith.constant 0 : index
    %42 = vector.load %arg5[%c0_50, %c6, %c0_51, %c0_52] : memref<1x9x8x4xf32, #tpu.memory_space<vmem>>, vector<1x1x8x4xf32>
    %43 = vector.shape_cast %42 : vector<1x1x8x4xf32> to vector<8x4xf32>
    %cst_53 = arith.constant dense<0.000000e+00> : vector<8x80xf32>
    %44 = tpu.matmul %43, %41, %cst_53 {dimension_numbers = #tpu.dot_dimension_numbers<[1], [0], [0], [1], [0, 0, 1, 1], [], []>} : vector<8x4xf32>, vector<4x80xf32>, vector<8x80xf32> -> vector<8x80xf32>
    %45 = arith.addf %39, %44 : vector<8x80xf32>
    %c0_54 = arith.constant 0 : index
    %c0_55 = arith.constant 0 : index
    %c0_56 = arith.constant 0 : index
    %c21 = arith.constant 21 : index
    %46 = vector.load %arg4[%c0_54, %c0_55, %c0_56, %c21] : memref<1x1x4x102xf32, #tpu.memory_space<vmem>>, vector<1x1x4x80xf32>
    %47 = vector.shape_cast %46 : vector<1x1x4x80xf32> to vector<4x80xf32>
    %c0_57 = arith.constant 0 : index
    %c7 = arith.constant 7 : index
    %c0_58 = arith.constant 0 : index
    %c0_59 = arith.constant 0 : index
    %48 = vector.load %arg5[%c0_57, %c7, %c0_58, %c0_59] : memref<1x9x8x4xf32, #tpu.memory_space<vmem>>, vector<1x1x8x4xf32>
    %49 = vector.shape_cast %48 : vector<1x1x8x4xf32> to vector<8x4xf32>
    %cst_60 = arith.constant dense<0.000000e+00> : vector<8x80xf32>
    %50 = tpu.matmul %49, %47, %cst_60 {dimension_numbers = #tpu.dot_dimension_numbers<[1], [0], [0], [1], [0, 0, 1, 1], [], []>} : vector<8x4xf32>, vector<4x80xf32>, vector<8x80xf32> -> vector<8x80xf32>
    %51 = arith.addf %45, %50 : vector<8x80xf32>
    %c0_61 = arith.constant 0 : index
    %c0_62 = arith.constant 0 : index
    %c0_63 = arith.constant 0 : index
    %c22 = arith.constant 22 : index
    %52 = vector.load %arg4[%c0_61, %c0_62, %c0_63, %c22] : memref<1x1x4x102xf32, #tpu.memory_space<vmem>>, vector<1x1x4x80xf32>
    %53 = vector.shape_cast %52 : vector<1x1x4x80xf32> to vector<4x80xf32>
    %c0_64 = arith.constant 0 : index
    %c8 = arith.constant 8 : index
    %c0_65 = arith.constant 0 : index
    %c0_66 = arith.constant 0 : index
    %54 = vector.load %arg5[%c0_64, %c8, %c0_65, %c0_66] : memref<1x9x8x4xf32, #tpu.memory_space<vmem>>, vector<1x1x8x4xf32>
    %55 = vector.shape_cast %54 : vector<1x1x8x4xf32> to vector<8x4xf32>
    %cst_67 = arith.constant dense<0.000000e+00> : vector<8x80xf32>
    %56 = tpu.matmul %55, %53, %cst_67 {dimension_numbers = #tpu.dot_dimension_numbers<[1], [0], [0], [1], [0, 0, 1, 1], [], []>} : vector<8x4xf32>, vector<4x80xf32>, vector<8x80xf32> -> vector<8x80xf32>
    %57 = arith.addf %51, %56 : vector<8x80xf32>
    %c0_68 = arith.constant 0 : index
    %c0_69 = arith.constant 0 : index
    %58 = vector.load %arg9[%c0_68, %c0_69] : memref<8x80xf32, #tpu.memory_space<vmem>>, vector<8x80xf32>
    tpu.vector_store %arg9[%c0_68, %c0_69], %57 {strides = array<i32>} : memref<8x80xf32, #tpu.memory_space<vmem>>, vector<8x80xf32>,
    %c2_i32 = arith.constant 2 : i32
    %59 = arith.cmpi eq, %arg3, %c2_i32 : i32
    %60 = arith.extui %59 : i1 to i32
    %c0_i32_70 = arith.constant 0 : i32
    %61 = arith.cmpi ne, %60, %c0_i32_70 : i32
    scf.if %61 {
      %c0_71 = arith.constant 0 : index
      %c0_72 = arith.constant 0 : index
      %62 = vector.load %arg9[%c0_71, %c0_72] : memref<8x80xf32, #tpu.memory_space<vmem>>, vector<8x80xf32>
      %c0_73 = arith.constant 0 : index
      %c0_74 = arith.constant 0 : index
      %63 = vector.load %arg6[%c0_73, %c0_74] : memref<8x1xf32, #tpu.memory_space<vmem>>, vector<8x1xf32>
      %64 = vector.broadcast %63 : vector<8x1xf32> to vector<8x80xf32>
      %65 = arith.mulf %62, %64 : vector<8x80xf32>
      %c0_75 = arith.constant 0 : index
      %c0_76 = arith.constant 0 : index
      %66 = vector.load %arg7[%c0_75, %c0_76] : memref<8x1xf32, #tpu.memory_space<vmem>>, vector<8x1xf32>
      %67 = vector.broadcast %66 : vector<8x1xf32> to vector<8x80xf32>
      %68 = arith.addf %65, %67 : vector<8x80xf32>
      %cst_77 = arith.constant 0.000000e+00 : f32
      %69 = vector.broadcast %cst_77 : f32 to vector<8x80xf32>
      %70 = arith.maximumf %68, %69 : vector<8x80xf32>
      %c0_78 = arith.constant 0 : index
      %c0_79 = arith.constant 0 : index
      %c0_80 = arith.constant 0 : index
      %c0_81 = arith.constant 0 : index
      %71 = vector.load %arg8[%c0_78, %c0_79, %c0_80, %c0_81] : memref<1x1x8x80xf32, #tpu.memory_space<vmem>>, vector<1x1x8x80xf32>
      %72 = vector.shape_cast %71 : vector<1x1x8x80xf32> to vector<8x80xf32>
      %73 = vector.shape_cast %70 : vector<8x80xf32> to vector<1x1x8x80xf32>
      tpu.vector_store %arg8[%c0_78, %c0_79, %c0_80, %c0_81], %73 {strides = array<i32>} : memref<1x1x8x80xf32, #tpu.memory_space<vmem>>, vector<1x1x8x80xf32>,
    } else {
    }
    return
  }
  func.func @transform_0(%arg0: i32, %arg1: i32, %arg2: i32, %arg3: i32) -> (i32, i32, i32, i32) {
    %0 = arith.addi %arg1, %arg3 : i32
    %c0_i32 = arith.constant 0 : i32
    %c0_i32_0 = arith.constant 0 : i32
    %c0_i32_1 = arith.constant 0 : i32
    return %arg0, %0, %c0_i32, %c0_i32_0 : i32, i32, i32, i32
  }
  func.func @transform_1(%arg0: i32, %arg1: i32, %arg2: i32, %arg3: i32) -> (i32, i32, i32, i32) {
    %c0_i32 = arith.constant 0 : i32
    %c0_i32_0 = arith.constant 0 : i32
    %c0_i32_1 = arith.constant 0 : i32
    return %arg3, %c0_i32, %arg2, %c0_i32_0 : i32, i32, i32, i32
  }
  func.func @transform_2(%arg0: i32, %arg1: i32, %arg2: i32, %arg3: i32) -> (i32, i32) {
    %c0_i32 = arith.constant 0 : i32
    %c0_i32_0 = arith.constant 0 : i32
    return %arg2, %c0_i32 : i32, i32
  }
  func.func @transform_3(%arg0: i32, %arg1: i32, %arg2: i32, %arg3: i32) -> (i32, i32) {
    %c0_i32 = arith.constant 0 : i32
    %c0_i32_0 = arith.constant 0 : i32
    return %arg2, %c0_i32 : i32, i32
  }
  func.func @transform_4(%arg0: i32, %arg1: i32, %arg2: i32, %arg3: i32) -> (i32, i32, i32, i32) {
    %c0_i32 = arith.constant 0 : i32
    %c0_i32_0 = arith.constant 0 : i32
    return %arg0, %arg1, %arg2, %c0_i32 : i32, i32, i32, i32
  }
}

</mosaic_0001>

<llo_original>
// kernel: a_call__.1
$region0: #{a_call__.1}
  #allocation0 [shape = 'u32[]', space=smem, size = 0x4, offset = 0x4, fixed_abs, tag = 'smem constant byte address 0x4 - core index']
  #allocation1 [shape = 'u32[144,128]{1,0:T(1,128)}', space=vmem, size = 0x12000, scoped, tag = 'internal scratch']
  #allocation2 [shape = 'f32[8,80]{1,0:T(8,128)}', space=vmem, size = 0x1000, scoped, tag = 'scratch operand']
  %s0 = inlined_call_operand.vmem [shape: f32[2,6,4,102], index: 0, kind: input, shape index: {}]
  %s1 = inlined_call_operand.vmem [shape: f32[3,9,8,4], index: 1, kind: input, shape index: {}]
  %s2 = inlined_call_operand.vmem [shape: f32[8,1], index: 2, kind: input, shape index: {}]
  %s3 = inlined_call_operand.vmem [shape: f32[8,1], index: 3, kind: input, shape index: {}]
  %s4 = inlined_call_operand.vmem [shape: f32[2,4,8,80], index: 4, kind: output, shape index: {}]
  %s5 = sld [smem:[#allocation0]]
  $region57: #{a_call__.1} parent=0
    _
  %s7 = ssub.s32 1, %s5
  %s8 = scalar_select 0, %s7, %s5
  loop: start=0, step=1, limit=26
  $region2: #{a_call__.1} parent=0 // loop_pre_header
    _
  $region3: #{a_call__.1} parent=0 // loop_header
    %s10 = sphi 0, %s14
    %p11 = scmp.ge.s32.totalorder %s10, 26
    %s17 = sphi 0, %s43
    %s18 = sphi 0, %s39
    %s19 = sphi 0, %s35
    %s20 = sphi 0, %s31
    %s21 = sphi 0, %s17
    %s22 = sphi 0, %s18
    %s23 = sphi 0, %s19
    %s24 = sphi 0, %s20
    %s25 = sphi 0, %s21
    %s26 = sphi 0, %s22
    %s27 = sphi 0, %s23
    %s28 = sphi 0, %s24
    %s50 = sphi 0, %s52
    %s53 = sphi 0, %s50
    %s54 = sphi 0, %s53
    %s70 = sphi 0, %s54
    %s78 = sphi 0, %s80
    %s81 = sphi 0, %s78
    %s82 = sphi 0, %s81
    %s98 = sphi 0, %s82
    %s104 = sphi 0, %s106
    %s107 = sphi 0, %s104
    %s108 = sphi 0, %s107
    %s124 = sphi 0, %s108
    %s130 = sphi 0, %s132
    %s133 = sphi 0, %s130
    %s134 = sphi 0, %s133
    %s150 = sphi 0, %s134
    %s160 = sphi 0, %s162
    %s163 = sphi 0, %s160
    %s164 = sphi 0, %s163
    %s180 = sphi 0, %s164
  $region4: #{a_call__.1} parent=0 // loop_header_branch
    %13 = sbr.rel (%p11) target = $region8
  $region5: #{a_call__.1} parent=0 // loop_body
    %s15 = ssub.s32 %s10, 1
    %s16 = ssub.s32 %s10, 2
    %s29 = sadd.s32 1, %s20
    %p30 = scmp.ge.s32.totalorder %s29, 3
    %s31 = scalar_select %p30, 0, %s29
    %s32 = sadd.s32 1, %s19
    %s33 = scalar_select %p30, %s32, %s19
    %p34 = scmp.ge.s32.totalorder %s33, 1
    %s35 = scalar_select %p34, 0, %s33
    %s36 = sadd.s32 1, %s18
    %s37 = scalar_select %p34, %s36, %s18
    %p38 = scmp.ge.s32.totalorder %s37, 4
    %s39 = scalar_select %p38, 0, %s37
    %s40 = sadd.s32 1, %s17
    %s41 = scalar_select %p38, %s40, %s17
    %p42 = scmp.ge.s32.totalorder %s41, 2
    %s43 = scalar_select %p42, 0, %s41
    %s44 = sadd.s32 %s18, %s20
    %s45 = sadd.s32 %s39, %s31
    %s46 = ssub.s32 %s17, %s43
    %s47 = ssub.s32 %s44, %s45
    %s48 = sor.u32 %s46, %s47
    %p49 = scmp.eq.s32.totalorder %s48, 0
    %s51 = sadd.s32 %s50, 1
    %s52 = scalar_select %p49, %s50, %s51
    %p55 = pneg %p49
    %p56 = scmp.eq.s32.totalorder %s10, 23
    %p57 = por %p55, %p56
    %p58 = scmp.ne.s32.totalorder %s50, %s53
    %p59 = scmp.eq.s32.totalorder %s10, 0
    %p60 = por %p58, %p59
    %p61 = scmp.ne.s32.totalorder %s50, %s53
    %p62 = scmp.eq.s32.totalorder %s15, 23
    %p63 = por %p61, %p62
    %p64 = scmp.ne.s32.totalorder %s53, %s54
    %p65 = scmp.eq.s32.totalorder %s15, 0
    %p66 = por %p64, %p65
    %p67 = scmp.ne.s32.totalorder %s53, %s54
    %p68 = scmp.eq.s32.totalorder %s16, 23
    %p69 = por %p67, %p68
    %p71 = scmp.ne.s32.totalorder %s54, %s70
    %p72 = scmp.eq.s32.totalorder %s16, 0
    %p73 = por %p71, %p72
    %s74 = ssub.s32 %s20, %s31
    %s75 = ssub.s32 %s19, %s35
    %s76 = sor.u32 %s74, %s75
    %p77 = scmp.eq.s32.totalorder %s76, 0
    %s79 = sadd.s32 %s78, 1
    %s80 = scalar_select %p77, %s78, %s79
    %p83 = pneg %p77
    %p84 = scmp.eq.s32.totalorder %s10, 23
    %p85 = por %p83, %p84
    %p86 = scmp.ne.s32.totalorder %s78, %s81
    %p87 = scmp.eq.s32.totalorder %s10, 0
    %p88 = por %p86, %p87
    %p89 = scmp.ne.s32.totalorder %s78, %s81
    %p90 = scmp.eq.s32.totalorder %s15, 23
    %p91 = por %p89, %p90
    %p92 = scmp.ne.s32.totalorder %s81, %s82
    %p93 = scmp.eq.s32.totalorder %s15, 0
    %p94 = por %p92, %p93
    %p95 = scmp.ne.s32.totalorder %s81, %s82
    %p96 = scmp.eq.s32.totalorder %s16, 23
    %p97 = por %p95, %p96
    %p99 = scmp.ne.s32.totalorder %s82, %s98
    %p100 = scmp.eq.s32.totalorder %s16, 0
    %p101 = por %p99, %p100
    %s102 = ssub.s32 %s19, %s35
    %p103 = scmp.eq.s32.totalorder %s102, 0
    %s105 = sadd.s32 %s104, 1
    %s106 = scalar_select %p103, %s104, %s105
    %p109 = pneg %p103
    %p110 = scmp.eq.s32.totalorder %s10, 23
    %p111 = por %p109, %p110
    %p112 = scmp.ne.s32.totalorder %s104, %s107
    %p113 = scmp.eq.s32.totalorder %s10, 0
    %p114 = por %p112, %p113
    %p115 = scmp.ne.s32.totalorder %s104, %s107
    %p116 = scmp.eq.s32.totalorder %s15, 23
    %p117 = por %p115, %p116
    %p118 = scmp.ne.s32.totalorder %s107, %s108
    %p119 = scmp.eq.s32.totalorder %s15, 0
    %p120 = por %p118, %p119
    %p121 = scmp.ne.s32.totalorder %s107, %s108
    %p122 = scmp.eq.s32.totalorder %s16, 23
    %p123 = por %p121, %p122
    %p125 = scmp.ne.s32.totalorder %s108, %s124
    %p126 = scmp.eq.s32.totalorder %s16, 0
    %p127 = por %p125, %p126
    %s128 = ssub.s32 %s19, %s35
    %p129 = scmp.eq.s32.totalorder %s128, 0
    %s131 = sadd.s32 %s130, 1
    %s132 = scalar_select %p129, %s130, %s131
    %p135 = pneg %p129
    %p136 = scmp.eq.s32.totalorder %s10, 23
    %p137 = por %p135, %p136
    %p138 = scmp.ne.s32.totalorder %s130, %s133
    %p139 = scmp.eq.s32.totalorder %s10, 0
    %p140 = por %p138, %p139
    %p141 = scmp.ne.s32.totalorder %s130, %s133
    %p142 = scmp.eq.s32.totalorder %s15, 23
    %p143 = por %p141, %p142
    %p144 = scmp.ne.s32.totalorder %s133, %s134
    %p145 = scmp.eq.s32.totalorder %s15, 0
    %p146 = por %p144, %p145
    %p147 = scmp.ne.s32.totalorder %s133, %s134
    %p148 = scmp.eq.s32.totalorder %s16, 23
    %p149 = por %p147, %p148
    %p151 = scmp.ne.s32.totalorder %s134, %s150
    %p152 = scmp.eq.s32.totalorder %s16, 0
    %p153 = por %p151, %p152
    %s154 = ssub.s32 %s17, %s43
    %s155 = ssub.s32 %s18, %s39
    %s156 = sor.u32 %s154, %s155
    %s157 = ssub.s32 %s19, %s35
    %s158 = sor.u32 %s156, %s157
    %p159 = scmp.eq.s32.totalorder %s158, 0
    %s161 = sadd.s32 %s160, 1
    %s162 = scalar_select %p159, %s160, %s161
    %p165 = pneg %p159
    %p166 = scmp.eq.s32.totalorder %s10, 23
    %p167 = por %p165, %p166
    %p168 = scmp.ne.s32.totalorder %s160, %s163
    %p169 = scmp.eq.s32.totalorder %s10, 0
    %p170 = por %p168, %p169
    %p171 = scmp.ne.s32.totalorder %s160, %s163
    %p172 = scmp.eq.s32.totalorder %s15, 23
    %p173 = por %p171, %p172
    %p174 = scmp.ne.s32.totalorder %s163, %s164
    %p175 = scmp.eq.s32.totalorder %s15, 0
    %p176 = por %p174, %p175
    %p177 = scmp.ne.s32.totalorder %s163, %s164
    %p178 = scmp.eq.s32.totalorder %s16, 23
    %p179 = por %p177, %p178
    %p181 = scmp.ne.s32.totalorder %s164, %s180
    %p182 = scmp.eq.s32.totalorder %s16, 0
    %p183 = por %p181, %p182
    %p184 = scmp.le.s32.totalorder 1, %s10
    %p185 = scmp.lt.s32.totalorder %s10, 25
    %p186 = pnand %p184, %p185
    %p187 = pneg %p186
    // Predicated region
    $region9: #{a_call__.1} parent=5 // pred_check
      _
    $region10: #{a_call__.1} parent=5 // pred_check_branch
      %189 = sbr.rel (%p186) target = $region12
    $region11: #{a_call__.1} parent=5 // pred_region
      %s190 = ssub.s32 %s10, 1
      // Predicated region
      $region13: #{a_call__.1} parent=11 // pred_check
        %p191 = pneg %p120
      $region14: #{a_call__.1} parent=11 // pred_check_branch
        %193 = sbr.rel (%p191) target = $region16
      $region15: #{a_call__.1} parent=11 // pred_region
        %p194 = scmp.lt.s32.totalorder %s23, 0
        %s195 = scalar_select %p194, %s23, 0
        %s196 = smul.addr %s195, 8
        %s197 = scalar_lea.vmem %s2, %s196
      $region16: #{a_call__.1} parent=11 // pred_fallthru
        _
      // Predicated region
      $region17: #{a_call__.1} parent=11 // pred_check
        %p198 = pneg %p146
      $region18: #{a_call__.1} parent=11 // pred_check_branch
        %200 = sbr.rel (%p198) target = $region20
      $region19: #{a_call__.1} parent=11 // pred_region
        %p201 = scmp.lt.s32.totalorder %s23, 0
        %s202 = scalar_select %p201, %s23, 0
        %s203 = smul.addr %s202, 8
        %s204 = scalar_lea.vmem %s3, %s203
      $region20: #{a_call__.1} parent=11 // pred_fallthru
        _
    $region12: #{a_call__.1} parent=5 // pred_fallthru
      _
    %p205 = scmp.lt.s32.totalorder %s10, 24
    // Predicated region
    $region21: #{a_call__.1} parent=5 // pred_check
      %p206 = pneg %p205
    $region22: #{a_call__.1} parent=5 // pred_check_branch
      %208 = sbr.rel (%p206) target = $region24
    $region23: #{a_call__.1} parent=5 // pred_region
      // Predicated region
      $region25: #{a_call__.1} parent=23 // pred_check
        %p209 = pneg %p60
      $region26: #{a_call__.1} parent=23 // pred_check_branch
        %211 = sbr.rel (%p209) target = $region28
      $region27: #{a_call__.1} parent=23 // pred_region
        %s212 = sadd.s32 %s18, %s20
        %p213 = scmp.lt.s32.totalorder %s17, 1
        %s214 = scalar_select %p213, %s17, 1
        %p215 = scmp.lt.s32.totalorder %s212, 5
        %s216 = scalar_select %p215, %s212, 5
        %s217 = smul.addr %s214, 6
        %s218 = sadd.s32 %s216, %s217
        %s219 = smul.addr %s218, 4
        %s220 = scalar_lea.vmem %s0, %s219
        %s221 = sadd.s32 %s18, %s20
      $region28: #{a_call__.1} parent=23 // pred_fallthru
        _
      // Predicated region
      $region29: #{a_call__.1} parent=23 // pred_check
        %p222 = pneg %p88
      $region30: #{a_call__.1} parent=23 // pred_check_branch
        %224 = sbr.rel (%p222) target = $region32
      $region31: #{a_call__.1} parent=23 // pred_region
        %p225 = scmp.lt.s32.totalorder %s20, 2
        %s226 = scalar_select %p225, %s20, 2
        %p227 = scmp.lt.s32.totalorder %s19, 0
        %s228 = scalar_select %p227, %s19, 0
        %s229 = smul.addr %s226, 9
        %s230 = sadd.s32 %s228, %s229
        %s231 = smul.addr %s230, 8
        %s232 = scalar_lea.vmem %s1, %s231
      $region32: #{a_call__.1} parent=23 // pred_fallthru
        _
    $region24: #{a_call__.1} parent=5 // pred_fallthru
      _
    %p233 = scmp.le.s32.totalorder 1, %s10
    %p234 = scmp.lt.s32.totalorder %s10, 25
    %p235 = pnand %p233, %p234
    %p236 = pneg %p235
    // Predicated region
    $region33: #{a_call__.1} parent=5 // pred_check
      _
    $region34: #{a_call__.1} parent=5 // pred_check_branch
      %238 = sbr.rel (%p235) target = $region36
    $region35: #{a_call__.1} parent=5 // pred_region
      %s239 = ssub.s32 %s10, 1
      %s240 = sadd.s32 %s22, %s24
      %p241 = scmp.lt.s32.totalorder %s21, 1
      %s242 = scalar_select %p241, %s21, 1
      %p243 = scmp.lt.s32.totalorder %s240, 5
      %s244 = scalar_select %p243, %s240, 5
      %s245 = smul.addr %s242, 6
      %s246 = sadd.s32 %s244, %s245
      %s247 = smul.addr %s246, 4
      %s248 = scalar_lea.vmem %s0, %s247
      %p249 = pneg %p66
      %p250 = pneg %p63
      %p251 = scmp.lt.s32.totalorder %s24, 2
      %s252 = scalar_select %p251, %s24, 2
      %p253 = scmp.lt.s32.totalorder %s23, 0
      %s254 = scalar_select %p253, %s23, 0
      %s255 = smul.addr %s252, 9
      %s256 = sadd.s32 %s254, %s255
      %s257 = smul.addr %s256, 8
      %s258 = scalar_lea.vmem %s1, %s257
      %p259 = pneg %p94
      %p260 = pneg %p91
      %p261 = scmp.lt.s32.totalorder %s23, 0
      %s262 = scalar_select %p261, %s23, 0
      %s263 = smul.addr %s262, 8
      %s264 = scalar_lea.vmem %s2, %s263
      %p265 = pneg %p120
      %p266 = pneg %p117
      %p267 = scmp.lt.s32.totalorder %s23, 0
      %s268 = scalar_select %p267, %s23, 0
      %s269 = smul.addr %s268, 8
      %s270 = scalar_lea.vmem %s3, %s269
      %p271 = pneg %p146
      %p272 = pneg %p143
      %p273 = pneg %p176
      %p274 = pneg %p173
      %p275 = scmp.lt.s32.totalorder %s21, 1
      %s276 = scalar_select %p275, %s21, 1
      %p277 = scmp.lt.s32.totalorder %s22, 3
      %s278 = scalar_select %p277, %s22, 3
      %p279 = scmp.lt.s32.totalorder %s23, 0
      %s280 = scalar_select %p279, %s23, 0
      %s281 = sadd.s32 %s280, %s278
      %s282 = smul.addr %s276, 4
      %s283 = sadd.s32 %s281, %s282
      %s284 = smul.addr %s283, 8
      %s285 = scalar_lea.vmem %s4, %s284
      %s286 = sadd.s32 %s22, %s24
      %p287 = scmp.lt.s32.totalorder %s21, 1
      %s288 = scalar_select %p287, %s21, 1
      %p289 = scmp.lt.s32.totalorder %s286, 5
      %s290 = scalar_select %p289, %s286, 5
      %s291 = smul.addr %s288, 6
      %s292 = sadd.s32 %s290, %s291
      %s293 = smul.addr %s292, 4
      %s294 = scalar_lea.vmem %s0, %s293
      %s295 = sadd.s32 %s22, %s24
      %p296 = scmp.lt.s32.totalorder %s24, 2
      %s297 = scalar_select %p296, %s24, 2
      %p298 = scmp.lt.s32.totalorder %s23, 0
      %s299 = scalar_select %p298, %s23, 0
      %s300 = smul.addr %s297, 9
      %s301 = sadd.s32 %s299, %s300
      %s302 = smul.addr %s301, 8
      %s303 = scalar_lea.vmem %s1, %s302
      %p304 = scmp.lt.s32.totalorder %s23, 0
      %s305 = scalar_select %p304, %s23, 0
      %s306 = smul.addr %s305, 8
      %s307 = scalar_lea.vmem %s2, %s306
      %p308 = scmp.lt.s32.totalorder %s23, 0
      %s309 = scalar_select %p308, %s23, 0
      %s310 = smul.addr %s309, 8
      %s311 = scalar_lea.vmem %s3, %s310
      %p312 = scmp.lt.s32.totalorder %s21, 1
      %s313 = scalar_select %p312, %s21, 1
      %p314 = scmp.lt.s32.totalorder %s22, 3
      %s315 = scalar_select %p314, %s22, 3
      %p316 = scmp.lt.s32.totalorder %s23, 0
      %s317 = scalar_select %p316, %s23, 0
      %s318 = sadd.s32 %s317, %s315
      %s319 = smul.addr %s313, 4
      %s320 = sadd.s32 %s318, %s319
      %s321 = smul.addr %s320, 8
      %s322 = scalar_lea.vmem %s4, %s321
      %p323 = scmp.eq.s32.totalorder %s24, 0
      // Predicated region
      $region37: #{a_call__.1} parent=35 // pred_check
        %p324 = pneg %p323
      $region38: #{a_call__.1} parent=35 // pred_check_branch
        %326 = sbr.rel (%p324) target = $region40
      $region39: #{a_call__.1} parent=35 // pred_region
        %vm327 = vcmask 654336
        %328 = vst.msk [vmem:[#allocation2] sm:$0xff] %vm327, 0.0
      $region40: #{a_call__.1} parent=35 // pred_fallthru
        _
      %v329 = vld [vmem:[#allocation2] sm:$0xff]
      %v330 = vld [vmem:[%s294] sm:$0xf]
      %v331 = vld [vmem:[%s303] sm:$0xff]
      %vm332 = vcmask 31744
      %v334 = vsel %vm332, %v331, 0
      %vm336 = vcmask 1043456
      %v338 = vsel %vm336, %v330, 0
      %340 = vmatprep.subr.mxu0 0.0
      %341 = vmatpush1.msra.mxu0 %v338
      %342 = vmatprep.subr.mxu0 0.0
      %343 = vmatpush1.msra.mxu0 0.0
      %344 = vmatprep.subr.mxu0 0.0
      %345 = vmatpush1.msra.mxu0 0.0
      %346 = vmatprep.subr.mxu0 0.0
      %347 = vmatpush1.msra.mxu0 0.0
      %348 = vmatprep.subr.mxu0 0.0
      %349 = vmatpush1.msra.mxu0 0.0
      %350 = vmatprep.subr.mxu0 0.0
      %351 = vmatpush1.msra.mxu0 0.0
      %352 = vmatprep.subr.mxu0 0.0
      %353 = vmatpush1.msra.mxu0 0.0
      %354 = vmatprep.subr.mxu0 0.0
      %355 = vmatpush1.msra.mxu0 0.0
      %356 = vmatprep.subr.mxu0 0.0
      %357 = vmatpush1.msra.mxu0 0.0
      %358 = vmatprep.subr.mxu0 0.0
      %359 = vmatpush1.msra.mxu0 0.0
      %360 = vmatprep.subr.mxu0 0.0
      %361 = vmatpush1.msra.mxu0 0.0
      %362 = vmatprep.subr.mxu0 0.0
      %363 = vmatpush1.msra.mxu0 0.0
      %364 = vmatprep.subr.mxu0 0.0
      %365 = vmatpush1.msra.mxu0 0.0
      %366 = vmatprep.subr.mxu0 0.0
      %367 = vmatpush1.msra.mxu0 0.0
      %368 = vmatprep.subr.mxu0 0.0
      %369 = vmatpush1.msra.mxu0 0.0
      %370 = vmatprep.subr.mxu0 0.0
      %371 = vmatpush1.msra.mxu0 0.0
      %372 = vmatprep.subr.mxu0 0.0
      %373 = vmatpush1.msra.mxu0 0.0
      %374 = vmatprep.subr.mxu0 0.0
      %375 = vmatpush1.msra.mxu0 0.0
      %376 = vmatprep.subr.mxu0 0.0
      %377 = vmatpush1.msra.mxu0 0.0
      %378 = vmatprep.subr.mxu0 0.0
      %379 = vmatpush1.msra.mxu0 0.0
      %380 = vmatprep.subr.mxu0 0.0
      %381 = vmatpush1.msra.mxu0 0.0
      %382 = vmatprep.subr.mxu0 0.0
      %383 = vmatpush1.msra.mxu0 0.0
      %384 = vmatprep.subr.mxu0 0.0
      %385 = vmatpush1.msra.mxu0 0.0
      %386 = vmatprep.subr.mxu0 0.0
      %387 = vmatpush1.msra.mxu0 0.0
      %388 = vmatprep.subr.mxu0 0.0
      %389 = vmatpush1.msra.mxu0 0.0
      %390 = vmatprep.subr.mxu0 0.0
      %391 = vmatpush1.msra.mxu0 0.0
      %392 = vmatprep.subr.mxu0 0.0
      %393 = vmatpush1.msra.mxu0 0.0
      %394 = vmatprep.subr.mxu0 0.0
      %395 = vmatpush1.msra.mxu0 0.0
      %396 = vmatprep.subr.mxu0 0.0
      %397 = vmatpush1.msra.mxu0 0.0
      %398 = vmatprep.subr.mxu0 0.0
      %399 = vmatpush1.msra.mxu0 0.0
      %400 = vmatprep.subr.mxu0 0.0
      %401 = vmatpush1.msra.mxu0 0.0
      %402 = vmatprep.subr.mxu0 0.0
      %403 = vmatpush1.msra.mxu0 0.0
      %404 = vmatprep.mubr.f32.mxu0 0.0
      %405 = vmatmul.mubr.f32.gmra.mrb[0].mxu0 %v334
      %v406 = vpop.f32.mrb[0].mxu0
      %v407 = vadd.f32 0.0, %v406
      %v408 = vpop.f32.mrb[0].mxu0
      %409 = vdwg.mxu0
      %v410 = vadd.f32 %v329, %v407
      %s411 = scalar_lea.vmem %s303, 8
      %v412 = vld [vmem:[%s411] sm:$0xff]
      %413 = vrot.lane.b32.xlu0 %v330, 127
      %v414 = vpop.permute.xlu0 %413
      %v416 = vsel %vm332, %v412, 0
      %v418 = vsel %vm336, %v414, 0
      %420 = vmatprep.subr.mxu0 0.0
      %421 = vmatpush1.msra.mxu0 %v418
      %422 = vmatprep.subr.mxu0 0.0
      %423 = vmatpush1.msra.mxu0 0.0
      %424 = vmatprep.subr.mxu0 0.0
      %425 = vmatpush1.msra.mxu0 0.0
      %426 = vmatprep.subr.mxu0 0.0
      %427 = vmatpush1.msra.mxu0 0.0
      %428 = vmatprep.subr.mxu0 0.0
      %429 = vmatpush1.msra.mxu0 0.0
      %430 = vmatprep.subr.mxu0 0.0
      %431 = vmatpush1.msra.mxu0 0.0
      %432 = vmatprep.subr.mxu0 0.0
      %433 = vmatpush1.msra.mxu0 0.0
      %434 = vmatprep.subr.mxu0 0.0
      %435 = vmatpush1.msra.mxu0 0.0
      %436 = vmatprep.subr.mxu0 0.0
      %437 = vmatpush1.msra.mxu0 0.0
      %438 = vmatprep.subr.mxu0 0.0
      %439 = vmatpush1.msra.mxu0 0.0
      %440 = vmatprep.subr.mxu0 0.0
      %441 = vmatpush1.msra.mxu0 0.0
      %442 = vmatprep.subr.mxu0 0.0
      %443 = vmatpush1.msra.mxu0 0.0
      %444 = vmatprep.subr.mxu0 0.0
      %445 = vmatpush1.msra.mxu0 0.0
      %446 = vmatprep.subr.mxu0 0.0
      %447 = vmatpush1.msra.mxu0 0.0
      %448 = vmatprep.subr.mxu0 0.0
      %449 = vmatpush1.msra.mxu0 0.0
      %450 = vmatprep.subr.mxu0 0.0
      %451 = vmatpush1.msra.mxu0 0.0
      %452 = vmatprep.subr.mxu0 0.0
      %453 = vmatpush1.msra.mxu0 0.0
      %454 = vmatprep.subr.mxu0 0.0
      %455 = vmatpush1.msra.mxu0 0.0
      %456 = vmatprep.subr.mxu0 0.0
      %457 = vmatpush1.msra.mxu0 0.0
      %458 = vmatprep.subr.mxu0 0.0
      %459 = vmatpush1.msra.mxu0 0.0
      %460 = vmatprep.subr.mxu0 0.0
      %461 = vmatpush1.msra.mxu0 0.0
      %462 = vmatprep.subr.mxu0 0.0
      %463 = vmatpush1.msra.mxu0 0.0
      %464 = vmatprep.subr.mxu0 0.0
      %465 = vmatpush1.msra.mxu0 0.0
      %466 = vmatprep.subr.mxu0 0.0
      %467 = vmatpush1.msra.mxu0 0.0
      %468 = vmatprep.subr.mxu0 0.0
      %469 = vmatpush1.msra.mxu0 0.0
      %470 = vmatprep.subr.mxu0 0.0
      %471 = vmatpush1.msra.mxu0 0.0
      %472 = vmatprep.subr.mxu0 0.0
      %473 = vmatpush1.msra.mxu0 0.0
      %474 = vmatprep.subr.mxu0 0.0
      %475 = vmatpush1.msra.mxu0 0.0
      %476 = vmatprep.subr.mxu0 0.0
      %477 = vmatpush1.msra.mxu0 0.0
      %478 = vmatprep.subr.mxu0 0.0
      %479 = vmatpush1.msra.mxu0 0.0
      %480 = vmatprep.subr.mxu0 0.0
      %481 = vmatpush1.msra.mxu0 0.0
      %482 = vmatprep.subr.mxu0 0.0
      %483 = vmatpush1.msra.mxu0 0.0
      %484 = vmatprep.mubr.f32.mxu0 0.0
      %485 = vmatmul.mubr.f32.gmra.mrb[0].mxu0 %v416
      %v486 = vpop.f32.mrb[0].mxu0
      %v487 = vadd.f32 0.0, %v486
      %v488 = vpop.f32.mrb[0].mxu0
      %489 = vdwg.mxu0
      %v490 = vadd.f32 %v410, %v487
      %s491 = scalar_lea.vmem %s303, 16
      %v492 = vld [vmem:[%s491] sm:$0xff]
      %493 = vrot.lane.b32.xlu0 %v330, 126
      %v494 = vpop.permute.xlu0 %493
      %v496 = vsel %vm332, %v492, 0
      %v498 = vsel %vm336, %v494, 0
      %500 = vmatprep.subr.mxu0 0.0
      %501 = vmatpush1.msra.mxu0 %v498
      %502 = vmatprep.subr.mxu0 0.0
      %503 = vmatpush1.msra.mxu0 0.0
      %504 = vmatprep.subr.mxu0 0.0
      %505 = vmatpush1.msra.mxu0 0.0
      %506 = vmatprep.subr.mxu0 0.0
      %507 = vmatpush1.msra.mxu0 0.0
      %508 = vmatprep.subr.mxu0 0.0
      %509 = vmatpush1.msra.mxu0 0.0
      %510 = vmatprep.subr.mxu0 0.0
      %511 = vmatpush1.msra.mxu0 0.0
      %512 = vmatprep.subr.mxu0 0.0
      %513 = vmatpush1.msra.mxu0 0.0
      %514 = vmatprep.subr.mxu0 0.0
      %515 = vmatpush1.msra.mxu0 0.0
      %516 = vmatprep.subr.mxu0 0.0
      %517 = vmatpush1.msra.mxu0 0.0
      %518 = vmatprep.subr.mxu0 0.0
      %519 = vmatpush1.msra.mxu0 0.0
      %520 = vmatprep.subr.mxu0 0.0
      %521 = vmatpush1.msra.mxu0 0.0
      %522 = vmatprep.subr.mxu0 0.0
      %523 = vmatpush1.msra.mxu0 0.0
      %524 = vmatprep.subr.mxu0 0.0
      %525 = vmatpush1.msra.mxu0 0.0
      %526 = vmatprep.subr.mxu0 0.0
      %527 = vmatpush1.msra.mxu0 0.0
      %528 = vmatprep.subr.mxu0 0.0
      %529 = vmatpush1.msra.mxu0 0.0
      %530 = vmatprep.subr.mxu0 0.0
      %531 = vmatpush1.msra.mxu0 0.0
      %532 = vmatprep.subr.mxu0 0.0
      %533 = vmatpush1.msra.mxu0 0.0
      %534 = vmatprep.subr.mxu0 0.0
      %535 = vmatpush1.msra.mxu0 0.0
      %536 = vmatprep.subr.mxu0 0.0
      %537 = vmatpush1.msra.mxu0 0.0
      %538 = vmatprep.subr.mxu0 0.0
      %539 = vmatpush1.msra.mxu0 0.0
      %540 = vmatprep.subr.mxu0 0.0
      %541 = vmatpush1.msra.mxu0 0.0
      %542 = vmatprep.subr.mxu0 0.0
      %543 = vmatpush1.msra.mxu0 0.0
      %544 = vmatprep.subr.mxu0 0.0
      %545 = vmatpush1.msra.mxu0 0.0
      %546 = vmatprep.subr.mxu0 0.0
      %547 = vmatpush1.msra.mxu0 0.0
      %548 = vmatprep.subr.mxu0 0.0
      %549 = vmatpush1.msra.mxu0 0.0
      %550 = vmatprep.subr.mxu0 0.0
      %551 = vmatpush1.msra.mxu0 0.0
      %552 = vmatprep.subr.mxu0 0.0
      %553 = vmatpush1.msra.mxu0 0.0
      %554 = vmatprep.subr.mxu0 0.0
      %555 = vmatpush1.msra.mxu0 0.0
      %556 = vmatprep.subr.mxu0 0.0
      %557 = vmatpush1.msra.mxu0 0.0
      %558 = vmatprep.subr.mxu0 0.0
      %559 = vmatpush1.msra.mxu0 0.0
      %560 = vmatprep.subr.mxu0 0.0
      %561 = vmatpush1.msra.mxu0 0.0
      %562 = vmatprep.subr.mxu0 0.0
      %563 = vmatpush1.msra.mxu0 0.0
      %564 = vmatprep.mubr.f32.mxu0 0.0
      %565 = vmatmul.mubr.f32.gmra.mrb[0].mxu0 %v496
      %v566 = vpop.f32.mrb[0].mxu0
      %v567 = vadd.f32 0.0, %v566
      %v568 = vpop.f32.mrb[0].mxu0
      %569 = vdwg.mxu0
      %v570 = vadd.f32 %v490, %v567
      %s571 = scalar_lea.vmem %s303, 24
      %v572 = vld [vmem:[%s571] sm:$0xff]
      %573 = vrot.lane.b32.xlu0 %v330, 118
      %v574 = vpop.permute.xlu0 %573
      %v576 = vsel %vm332, %v572, 0
      %v578 = vsel %vm336, %v574, 0
      %580 = vmatprep.subr.mxu0 0.0
      %581 = vmatpush1.msra.mxu0 %v578
      %582 = vmatprep.subr.mxu0 0.0
      %583 = vmatpush1.msra.mxu0 0.0
      %584 = vmatprep.subr.mxu0 0.0
      %585 = vmatpush1.msra.mxu0 0.0
      %586 = vmatprep.subr.mxu0 0.0
      %587 = vmatpush1.msra.mxu0 0.0
      %588 = vmatprep.subr.mxu0 0.0
      %589 = vmatpush1.msra.mxu0 0.0
      %590 = vmatprep.subr.mxu0 0.0
      %591 = vmatpush1.msra.mxu0 0.0
      %592 = vmatprep.subr.mxu0 0.0
      %593 = vmatpush1.msra.mxu0 0.0
      %594 = vmatprep.subr.mxu0 0.0
      %595 = vmatpush1.msra.mxu0 0.0
      %596 = vmatprep.subr.mxu0 0.0
      %597 = vmatpush1.msra.mxu0 0.0
      %598 = vmatprep.subr.mxu0 0.0
      %599 = vmatpush1.msra.mxu0 0.0
      %600 = vmatprep.subr.mxu0 0.0
      %601 = vmatpush1.msra.mxu0 0.0
      %602 = vmatprep.subr.mxu0 0.0
      %603 = vmatpush1.msra.mxu0 0.0
      %604 = vmatprep.subr.mxu0 0.0
      %605 = vmatpush1.msra.mxu0 0.0
      %606 = vmatprep.subr.mxu0 0.0
      %607 = vmatpush1.msra.mxu0 0.0
      %608 = vmatprep.subr.mxu0 0.0
      %609 = vmatpush1.msra.mxu0 0.0
      %610 = vmatprep.subr.mxu0 0.0
      %611 = vmatpush1.msra.mxu0 0.0
      %612 = vmatprep.subr.mxu0 0.0
      %613 = vmatpush1.msra.mxu0 0.0
      %614 = vmatprep.subr.mxu0 0.0
      %615 = vmatpush1.msra.mxu0 0.0
      %616 = vmatprep.subr.mxu0 0.0
      %617 = vmatpush1.msra.mxu0 0.0
      %618 = vmatprep.subr.mxu0 0.0
      %619 = vmatpush1.msra.mxu0 0.0
      %620 = vmatprep.subr.mxu0 0.0
      %621 = vmatpush1.msra.mxu0 0.0
      %622 = vmatprep.subr.mxu0 0.0
      %623 = vmatpush1.msra.mxu0 0.0
      %624 = vmatprep.subr.mxu0 0.0
      %625 = vmatpush1.msra.mxu0 0.0
      %626 = vmatprep.subr.mxu0 0.0
      %627 = vmatpush1.msra.mxu0 0.0
      %628 = vmatprep.subr.mxu0 0.0
      %629 = vmatpush1.msra.mxu0 0.0
      %630 = vmatprep.subr.mxu0 0.0
      %631 = vmatpush1.msra.mxu0 0.0
      %632 = vmatprep.subr.mxu0 0.0
      %633 = vmatpush1.msra.mxu0 0.0
      %634 = vmatprep.subr.mxu0 0.0
      %635 = vmatpush1.msra.mxu0 0.0
      %636 = vmatprep.subr.mxu0 0.0
      %637 = vmatpush1.msra.mxu0 0.0
      %638 = vmatprep.subr.mxu0 0.0
      %639 = vmatpush1.msra.mxu0 0.0
      %640 = vmatprep.subr.mxu0 0.0
      %641 = vmatpush1.msra.mxu0 0.0
      %642 = vmatprep.subr.mxu0 0.0
      %643 = vmatpush1.msra.mxu0 0.0
      %644 = vmatprep.mubr.f32.mxu0 0.0
      %645 = vmatmul.mubr.f32.gmra.mrb[0].mxu0 %v576
      %v646 = vpop.f32.mrb[0].mxu0
      %v647 = vadd.f32 0.0, %v646
      %v648 = vpop.f32.mrb[0].mxu0
      %649 = vdwg.mxu0
      %v650 = vadd.f32 %v570, %v647
      %s651 = scalar_lea.vmem %s303, 32
      %v652 = vld [vmem:[%s651] sm:$0xff]
      %653 = vrot.lane.b32.xlu0 %v330, 117
      %v654 = vpop.permute.xlu0 %653
      %v656 = vsel %vm332, %v652, 0
      %v658 = vsel %vm336, %v654, 0
      %660 = vmatprep.subr.mxu0 0.0
      %661 = vmatpush1.msra.mxu0 %v658
      %662 = vmatprep.subr.mxu0 0.0
      %663 = vmatpush1.msra.mxu0 0.0
      %664 = vmatprep.subr.mxu0 0.0
      %665 = vmatpush1.msra.mxu0 0.0
      %666 = vmatprep.subr.mxu0 0.0
      %667 = vmatpush1.msra.mxu0 0.0
      %668 = vmatprep.subr.mxu0 0.0
      %669 = vmatpush1.msra.mxu0 0.0
      %670 = vmatprep.subr.mxu0 0.0
      %671 = vmatpush1.msra.mxu0 0.0
      %672 = vmatprep.subr.mxu0 0.0
      %673 = vmatpush1.msra.mxu0 0.0
      %674 = vmatprep.subr.mxu0 0.0
      %675 = vmatpush1.msra.mxu0 0.0
      %676 = vmatprep.subr.mxu0 0.0
      %677 = vmatpush1.msra.mxu0 0.0
      %678 = vmatprep.subr.mxu0 0.0
      %679 = vmatpush1.msra.mxu0 0.0
      %680 = vmatprep.subr.mxu0 0.0
      %681 = vmatpush1.msra.mxu0 0.0
      %682 = vmatprep.subr.mxu0 0.0
      %683 = vmatpush1.msra.mxu0 0.0
      %684 = vmatprep.subr.mxu0 0.0
      %685 = vmatpush1.msra.mxu0 0.0
      %686 = vmatprep.subr.mxu0 0.0
      %687 = vmatpush1.msra.mxu0 0.0
      %688 = vmatprep.subr.mxu0 0.0
      %689 = vmatpush1.msra.mxu0 0.0
      %690 = vmatprep.subr.mxu0 0.0
      %691 = vmatpush1.msra.mxu0 0.0
      %692 = vmatprep.subr.mxu0 0.0
      %693 = vmatpush1.msra.mxu0 0.0
      %694 = vmatprep.subr.mxu0 0.0
      %695 = vmatpush1.msra.mxu0 0.0
      %696 = vmatprep.subr.mxu0 0.0
      %697 = vmatpush1.msra.mxu0 0.0
      %698 = vmatprep.subr.mxu0 0.0
      %699 = vmatpush1.msra.mxu0 0.0
      %700 = vmatprep.subr.mxu0 0.0
      %701 = vmatpush1.msra.mxu0 0.0
      %702 = vmatprep.subr.mxu0 0.0
      %703 = vmatpush1.msra.mxu0 0.0
      %704 = vmatprep.subr.mxu0 0.0
      %705 = vmatpush1.msra.mxu0 0.0
      %706 = vmatprep.subr.mxu0 0.0
      %707 = vmatpush1.msra.mxu0 0.0
      %708 = vmatprep.subr.mxu0 0.0
      %709 = vmatpush1.msra.mxu0 0.0
      %710 = vmatprep.subr.mxu0 0.0
      %711 = vmatpush1.msra.mxu0 0.0
      %712 = vmatprep.subr.mxu0 0.0
      %713 = vmatpush1.msra.mxu0 0.0
      %714 = vmatprep.subr.mxu0 0.0
      %715 = vmatpush1.msra.mxu0 0.0
      %716 = vmatprep.subr.mxu0 0.0
      %717 = vmatpush1.msra.mxu0 0.0
      %718 = vmatprep.subr.mxu0 0.0
      %719 = vmatpush1.msra.mxu0 0.0
      %720 = vmatprep.subr.mxu0 0.0
      %721 = vmatpush1.msra.mxu0 0.0
      %722 = vmatprep.subr.mxu0 0.0
      %723 = vmatpush1.msra.mxu0 0.0
      %724 = vmatprep.mubr.f32.mxu0 0.0
      %725 = vmatmul.mubr.f32.gmra.mrb[0].mxu0 %v656
      %v726 = vpop.f32.mrb[0].mxu0
      %v727 = vadd.f32 0.0, %v726
      %v728 = vpop.f32.mrb[0].mxu0
      %729 = vdwg.mxu0
      %v730 = vadd.f32 %v650, %v727
      %s731 = scalar_lea.vmem %s303, 40
      %v732 = vld [vmem:[%s731] sm:$0xff]
      %733 = vrot.lane.b32.xlu0 %v330, 116
      %v734 = vpop.permute.xlu0 %733
      %v736 = vsel %vm332, %v732, 0
      %v738 = vsel %vm336, %v734, 0
      %740 = vmatprep.subr.mxu0 0.0
      %741 = vmatpush1.msra.mxu0 %v738
      %742 = vmatprep.subr.mxu0 0.0
      %743 = vmatpush1.msra.mxu0 0.0
      %744 = vmatprep.subr.mxu0 0.0
      %745 = vmatpush1.msra.mxu0 0.0
      %746 = vmatprep.subr.mxu0 0.0
      %747 = vmatpush1.msra.mxu0 0.0
      %748 = vmatprep.subr.mxu0 0.0
      %749 = vmatpush1.msra.mxu0 0.0
      %750 = vmatprep.subr.mxu0 0.0
      %751 = vmatpush1.msra.mxu0 0.0
      %752 = vmatprep.subr.mxu0 0.0
      %753 = vmatpush1.msra.mxu0 0.0
      %754 = vmatprep.subr.mxu0 0.0
      %755 = vmatpush1.msra.mxu0 0.0
      %756 = vmatprep.subr.mxu0 0.0
      %757 = vmatpush1.msra.mxu0 0.0
      %758 = vmatprep.subr.mxu0 0.0
      %759 = vmatpush1.msra.mxu0 0.0
      %760 = vmatprep.subr.mxu0 0.0
      %761 = vmatpush1.msra.mxu0 0.0
      %762 = vmatprep.subr.mxu0 0.0
      %763 = vmatpush1.msra.mxu0 0.0
      %764 = vmatprep.subr.mxu0 0.0
      %765 = vmatpush1.msra.mxu0 0.0
      %766 = vmatprep.subr.mxu0 0.0
      %767 = vmatpush1.msra.mxu0 0.0
      %768 = vmatprep.subr.mxu0 0.0
      %769 = vmatpush1.msra.mxu0 0.0
      %770 = vmatprep.subr.mxu0 0.0
      %771 = vmatpush1.msra.mxu0 0.0
      %772 = vmatprep.subr.mxu0 0.0
      %773 = vmatpush1.msra.mxu0 0.0
      %774 = vmatprep.subr.mxu0 0.0
      %775 = vmatpush1.msra.mxu0 0.0
      %776 = vmatprep.subr.mxu0 0.0
      %777 = vmatpush1.msra.mxu0 0.0
      %778 = vmatprep.subr.mxu0 0.0
      %779 = vmatpush1.msra.mxu0 0.0
      %780 = vmatprep.subr.mxu0 0.0
      %781 = vmatpush1.msra.mxu0 0.0
      %782 = vmatprep.subr.mxu0 0.0
      %783 = vmatpush1.msra.mxu0 0.0
      %784 = vmatprep.subr.mxu0 0.0
      %785 = vmatpush1.msra.mxu0 0.0
      %786 = vmatprep.subr.mxu0 0.0
      %787 = vmatpush1.msra.mxu0 0.0
      %788 = vmatprep.subr.mxu0 0.0
      %789 = vmatpush1.msra.mxu0 0.0
      %790 = vmatprep.subr.mxu0 0.0
      %791 = vmatpush1.msra.mxu0 0.0
      %792 = vmatprep.subr.mxu0 0.0
      %793 = vmatpush1.msra.mxu0 0.0
      %794 = vmatprep.subr.mxu0 0.0
      %795 = vmatpush1.msra.mxu0 0.0
      %796 = vmatprep.subr.mxu0 0.0
      %797 = vmatpush1.msra.mxu0 0.0
      %798 = vmatprep.subr.mxu0 0.0
      %799 = vmatpush1.msra.mxu0 0.0
      %800 = vmatprep.subr.mxu0 0.0
      %801 = vmatpush1.msra.mxu0 0.0
      %802 = vmatprep.subr.mxu0 0.0
      %803 = vmatpush1.msra.mxu0 0.0
      %804 = vmatprep.mubr.f32.mxu0 0.0
      %805 = vmatmul.mubr.f32.gmra.mrb[0].mxu0 %v736
      %v806 = vpop.f32.mrb[0].mxu0
      %v807 = vadd.f32 0.0, %v806
      %v808 = vpop.f32.mrb[0].mxu0
      %809 = vdwg.mxu0
      %v810 = vadd.f32 %v730, %v807
      %s811 = scalar_lea.vmem %s303, 48
      %v812 = vld [vmem:[%s811] sm:$0xff]
      %813 = vrot.lane.b32.xlu0 %v330, 108
      %v814 = vpop.permute.xlu0 %813
      %v816 = vsel %vm332, %v812, 0
      %v818 = vsel %vm336, %v814, 0
      %820 = vmatprep.subr.mxu0 0.0
      %821 = vmatpush1.msra.mxu0 %v818
      %822 = vmatprep.subr.mxu0 0.0
      %823 = vmatpush1.msra.mxu0 0.0
      %824 = vmatprep.subr.mxu0 0.0
      %825 = vmatpush1.msra.mxu0 0.0
      %826 = vmatprep.subr.mxu0 0.0
      %827 = vmatpush1.msra.mxu0 0.0
      %828 = vmatprep.subr.mxu0 0.0
      %829 = vmatpush1.msra.mxu0 0.0
      %830 = vmatprep.subr.mxu0 0.0
      %831 = vmatpush1.msra.mxu0 0.0
      %832 = vmatprep.subr.mxu0 0.0
      %833 = vmatpush1.msra.mxu0 0.0
      %834 = vmatprep.subr.mxu0 0.0
      %835 = vmatpush1.msra.mxu0 0.0
      %836 = vmatprep.subr.mxu0 0.0
      %837 = vmatpush1.msra.mxu0 0.0
      %838 = vmatprep.subr.mxu0 0.0
      %839 = vmatpush1.msra.mxu0 0.0
      %840 = vmatprep.subr.mxu0 0.0
      %841 = vmatpush1.msra.mxu0 0.0
      %842 = vmatprep.subr.mxu0 0.0
      %843 = vmatpush1.msra.mxu0 0.0
      %844 = vmatprep.subr.mxu0 0.0
      %845 = vmatpush1.msra.mxu0 0.0
      %846 = vmatprep.subr.mxu0 0.0
      %847 = vmatpush1.msra.mxu0 0.0
      %848 = vmatprep.subr.mxu0 0.0
      %849 = vmatpush1.msra.mxu0 0.0
      %850 = vmatprep.subr.mxu0 0.0
      %851 = vmatpush1.msra.mxu0 0.0
      %852 = vmatprep.subr.mxu0 0.0
      %853 = vmatpush1.msra.mxu0 0.0
      %854 = vmatprep.subr.mxu0 0.0
      %855 = vmatpush1.msra.mxu0 0.0
      %856 = vmatprep.subr.mxu0 0.0
      %857 = vmatpush1.msra.mxu0 0.0
      %858 = vmatprep.subr.mxu0 0.0
      %859 = vmatpush1.msra.mxu0 0.0
      %860 = vmatprep.subr.mxu0 0.0
      %861 = vmatpush1.msra.mxu0 0.0
      %862 = vmatprep.subr.mxu0 0.0
      %863 = vmatpush1.msra.mxu0 0.0
      %864 = vmatprep.subr.mxu0 0.0
      %865 = vmatpush1.msra.mxu0 0.0
      %866 = vmatprep.subr.mxu0 0.0
      %867 = vmatpush1.msra.mxu0 0.0
      %868 = vmatprep.subr.mxu0 0.0
      %869 = vmatpush1.msra.mxu0 0.0
      %870 = vmatprep.subr.mxu0 0.0
      %871 = vmatpush1.msra.mxu0 0.0
      %872 = vmatprep.subr.mxu0 0.0
      %873 = vmatpush1.msra.mxu0 0.0
      %874 = vmatprep.subr.mxu0 0.0
      %875 = vmatpush1.msra.mxu0 0.0
      %876 = vmatprep.subr.mxu0 0.0
      %877 = vmatpush1.msra.mxu0 0.0
      %878 = vmatprep.subr.mxu0 0.0
      %879 = vmatpush1.msra.mxu0 0.0
      %880 = vmatprep.subr.mxu0 0.0
      %881 = vmatpush1.msra.mxu0 0.0
      %882 = vmatprep.subr.mxu0 0.0
      %883 = vmatpush1.msra.mxu0 0.0
      %884 = vmatprep.mubr.f32.mxu0 0.0
      %885 = vmatmul.mubr.f32.gmra.mrb[0].mxu0 %v816
      %v886 = vpop.f32.mrb[0].mxu0
      %v887 = vadd.f32 0.0, %v886
      %v888 = vpop.f32.mrb[0].mxu0
      %889 = vdwg.mxu0
      %v890 = vadd.f32 %v810, %v887
      %s891 = scalar_lea.vmem %s303, 56
      %v892 = vld [vmem:[%s891] sm:$0xff]
      %893 = vrot.lane.b32.xlu0 %v330, 107
      %v894 = vpop.permute.xlu0 %893
      %v896 = vsel %vm332, %v892, 0
      %v898 = vsel %vm336, %v894, 0
      %900 = vmatprep.subr.mxu0 0.0
      %901 = vmatpush1.msra.mxu0 %v898
      %902 = vmatprep.subr.mxu0 0.0
      %903 = vmatpush1.msra.mxu0 0.0
      %904 = vmatprep.subr.mxu0 0.0
      %905 = vmatpush1.msra.mxu0 0.0
      %906 = vmatprep.subr.mxu0 0.0
      %907 = vmatpush1.msra.mxu0 0.0
      %908 = vmatprep.subr.mxu0 0.0
      %909 = vmatpush1.msra.mxu0 0.0
      %910 = vmatprep.subr.mxu0 0.0
      %911 = vmatpush1.msra.mxu0 0.0
      %912 = vmatprep.subr.mxu0 0.0
      %913 = vmatpush1.msra.mxu0 0.0
      %914 = vmatprep.subr.mxu0 0.0
      %915 = vmatpush1.msra.mxu0 0.0
      %916 = vmatprep.subr.mxu0 0.0
      %917 = vmatpush1.msra.mxu0 0.0
      %918 = vmatprep.subr.mxu0 0.0
      %919 = vmatpush1.msra.mxu0 0.0
      %920 = vmatprep.subr.mxu0 0.0
      %921 = vmatpush1.msra.mxu0 0.0
      %922 = vmatprep.subr.mxu0 0.0
      %923 = vmatpush1.msra.mxu0 0.0
      %924 = vmatprep.subr.mxu0 0.0
      %925 = vmatpush1.msra.mxu0 0.0
      %926 = vmatprep.subr.mxu0 0.0
      %927 = vmatpush1.msra.mxu0 0.0
      %928 = vmatprep.subr.mxu0 0.0
      %929 = vmatpush1.msra.mxu0 0.0
      %930 = vmatprep.subr.mxu0 0.0
      %931 = vmatpush1.msra.mxu0 0.0
      %932 = vmatprep.subr.mxu0 0.0
      %933 = vmatpush1.msra.mxu0 0.0
      %934 = vmatprep.subr.mxu0 0.0
      %935 = vmatpush1.msra.mxu0 0.0
      %936 = vmatprep.subr.mxu0 0.0
      %937 = vmatpush1.msra.mxu0 0.0
      %938 = vmatprep.subr.mxu0 0.0
      %939 = vmatpush1.msra.mxu0 0.0
      %940 = vmatprep.subr.mxu0 0.0
      %941 = vmatpush1.msra.mxu0 0.0
      %942 = vmatprep.subr.mxu0 0.0
      %943 = vmatpush1.msra.mxu0 0.0
      %944 = vmatprep.subr.mxu0 0.0
      %945 = vmatpush1.msra.mxu0 0.0
      %946 = vmatprep.subr.mxu0 0.0
      %947 = vmatpush1.msra.mxu0 0.0
      %948 = vmatprep.subr.mxu0 0.0
      %949 = vmatpush1.msra.mxu0 0.0
      %950 = vmatprep.subr.mxu0 0.0
      %951 = vmatpush1.msra.mxu0 0.0
      %952 = vmatprep.subr.mxu0 0.0
      %953 = vmatpush1.msra.mxu0 0.0
      %954 = vmatprep.subr.mxu0 0.0
      %955 = vmatpush1.msra.mxu0 0.0
      %956 = vmatprep.subr.mxu0 0.0
      %957 = vmatpush1.msra.mxu0 0.0
      %958 = vmatprep.subr.mxu0 0.0
      %959 = vmatpush1.msra.mxu0 0.0
      %960 = vmatprep.subr.mxu0 0.0
      %961 = vmatpush1.msra.mxu0 0.0
      %962 = vmatprep.subr.mxu0 0.0
      %963 = vmatpush1.msra.mxu0 0.0
      %964 = vmatprep.mubr.f32.mxu0 0.0
      %965 = vmatmul.mubr.f32.gmra.mrb[0].mxu0 %v896
      %v966 = vpop.f32.mrb[0].mxu0
      %v967 = vadd.f32 0.0, %v966
      %v968 = vpop.f32.mrb[0].mxu0
      %969 = vdwg.mxu0
      %v970 = vadd.f32 %v890, %v967
      %s971 = scalar_lea.vmem %s303, 64
      %v972 = vld [vmem:[%s971] sm:$0xff]
      %973 = vrot.lane.b32.xlu0 %v330, 106
      %v974 = vpop.permute.xlu0 %973
      %v976 = vsel %vm332, %v972, 0
      %v978 = vsel %vm336, %v974, 0
      %980 = vmatprep.subr.mxu0 0.0
      %981 = vmatpush1.msra.mxu0 %v978
      %982 = vmatprep.subr.mxu0 0.0
      %983 = vmatpush1.msra.mxu0 0.0
      %984 = vmatprep.subr.mxu0 0.0
      %985 = vmatpush1.msra.mxu0 0.0
      %986 = vmatprep.subr.mxu0 0.0
      %987 = vmatpush1.msra.mxu0 0.0
      %988 = vmatprep.subr.mxu0 0.0
      %989 = vmatpush1.msra.mxu0 0.0
      %990 = vmatprep.subr.mxu0 0.0
      %991 = vmatpush1.msra.mxu0 0.0
      %992 = vmatprep.subr.mxu0 0.0
      %993 = vmatpush1.msra.mxu0 0.0
      %994 = vmatprep.subr.mxu0 0.0
      %995 = vmatpush1.msra.mxu0 0.0
      %996 = vmatprep.subr.mxu0 0.0
      %997 = vmatpush1.msra.mxu0 0.0
      %998 = vmatprep.subr.mxu0 0.0
      %999 = vmatpush1.msra.mxu0 0.0
      %1000 = vmatprep.subr.mxu0 0.0
      %1001 = vmatpush1.msra.mxu0 0.0
      %1002 = vmatprep.subr.mxu0 0.0
      %1003 = vmatpush1.msra.mxu0 0.0
      %1004 = vmatprep.subr.mxu0 0.0
      %1005 = vmatpush1.msra.mxu0 0.0
      %1006 = vmatprep.subr.mxu0 0.0
      %1007 = vmatpush1.msra.mxu0 0.0
      %1008 = vmatprep.subr.mxu0 0.0
      %1009 = vmatpush1.msra.mxu0 0.0
      %1010 = vmatprep.subr.mxu0 0.0
      %1011 = vmatpush1.msra.mxu0 0.0
      %1012 = vmatprep.subr.mxu0 0.0
      %1013 = vmatpush1.msra.mxu0 0.0
      %1014 = vmatprep.subr.mxu0 0.0
      %1015 = vmatpush1.msra.mxu0 0.0
      %1016 = vmatprep.subr.mxu0 0.0
      %1017 = vmatpush1.msra.mxu0 0.0
      %1018 = vmatprep.subr.mxu0 0.0
      %1019 = vmatpush1.msra.mxu0 0.0
      %1020 = vmatprep.subr.mxu0 0.0
      %1021 = vmatpush1.msra.mxu0 0.0
      %1022 = vmatprep.subr.mxu0 0.0
      %1023 = vmatpush1.msra.mxu0 0.0
      %1024 = vmatprep.subr.mxu0 0.0
      %1025 = vmatpush1.msra.mxu0 0.0
      %1026 = vmatprep.subr.mxu0 0.0
      %1027 = vmatpush1.msra.mxu0 0.0
      %1028 = vmatprep.subr.mxu0 0.0
      %1029 = vmatpush1.msra.mxu0 0.0
      %1030 = vmatprep.subr.mxu0 0.0
      %1031 = vmatpush1.msra.mxu0 0.0
      %1032 = vmatprep.subr.mxu0 0.0
      %1033 = vmatpush1.msra.mxu0 0.0
      %1034 = vmatprep.subr.mxu0 0.0
      %1035 = vmatpush1.msra.mxu0 0.0
      %1036 = vmatprep.subr.mxu0 0.0
      %1037 = vmatpush1.msra.mxu0 0.0
      %1038 = vmatprep.subr.mxu0 0.0
      %1039 = vmatpush1.msra.mxu0 0.0
      %1040 = vmatprep.subr.mxu0 0.0
      %1041 = vmatpush1.msra.mxu0 0.0
      %1042 = vmatprep.subr.mxu0 0.0
      %1043 = vmatpush1.msra.mxu0 0.0
      %1044 = vmatprep.mubr.f32.mxu0 0.0
      %1045 = vmatmul.mubr.f32.gmra.mrb[0].mxu0 %v976
      %v1046 = vpop.f32.mrb[0].mxu0
      %v1047 = vadd.f32 0.0, %v1046
      %v1048 = vpop.f32.mrb[0].mxu0
      %1049 = vdwg.mxu0
      %v1050 = vadd.f32 %v970, %v1047
      %vm1051 = vcmask 654336
      %1052 = vst.msk [vmem:[#allocation2] sm:$0xff] %vm1051, %v1050
      %p1053 = scmp.eq.s32.totalorder %s24, 2
      // Predicated region
      $region41: #{a_call__.1} parent=35 // pred_check
        %p1054 = pneg %p1053
      $region42: #{a_call__.1} parent=35 // pred_check_branch
        %1056 = sbr.rel (%p1054) target = $region44
      $region43: #{a_call__.1} parent=35 // pred_region
        %v1057 = vld [vmem:[#allocation2] sm:$0xff]
        %v1058 = vld [vmem:[%s307] sm:$0xff]
        %1060 = vset.pattern.permute.xlu0 0
        %1061 = vperm.xlu0 %1060, %v1058
        %v1062 = vpop.permute.xlu0 %1061
        %v1064 = vmul.f32 %v1057, %v1062
        %v1065 = vld [vmem:[%s311] sm:$0xff]
        %1067 = vset.pattern.permute.xlu0 0
        %1068 = vperm.xlu0 %1067, %v1065
        %v1069 = vpop.permute.xlu0 %1068
        %v1071 = vadd.f32 %v1064, %v1069
        %v1072 = vmax.f32 %v1071, 0.0
        %1073 = vst.msk [vmem:[%s322] sm:$0xff] %vm1051, %v1072
      $region44: #{a_call__.1} parent=35 // pred_fallthru
        _
      %p1074 = scmp.lt.s32.totalorder %s21, 1
      %s1075 = scalar_select %p1074, %s21, 1
      %p1076 = scmp.lt.s32.totalorder %s22, 3
      %s1077 = scalar_select %p1076, %s22, 3
      %p1078 = scmp.lt.s32.totalorder %s23, 0
      %s1079 = scalar_select %p1078, %s23, 0
      %s1080 = sadd.s32 %s1079, %s1077
      %s1081 = smul.addr %s1075, 4
      %s1082 = sadd.s32 %s1080, %s1081
      %s1083 = smul.addr %s1082, 8
      %s1084 = scalar_lea.vmem %s4, %s1083
      // Predicated region
      $region45: #{a_call__.1} parent=35 // pred_check
        %p1085 = pneg %p173
      $region46: #{a_call__.1} parent=35 // pred_check_branch
        %1087 = sbr.rel (%p1085) target = $region48
      $region47: #{a_call__.1} parent=35 // pred_region
        _
      $region48: #{a_call__.1} parent=35 // pred_fallthru
        _
    $region36: #{a_call__.1} parent=5 // pred_fallthru
      _
    %p1088 = scmp.le.s32.totalorder 2, %s10
    // Predicated region
    $region49: #{a_call__.1} parent=5 // pred_check
      %p1089 = pneg %p1088
    $region50: #{a_call__.1} parent=5 // pred_check_branch
      %1091 = sbr.rel (%p1089) target = $region52
    $region51: #{a_call__.1} parent=5 // pred_region
      %s1092 = ssub.s32 %s10, 2
      // Predicated region
      $region53: #{a_call__.1} parent=51 // pred_check
        %p1093 = pneg %p179
      $region54: #{a_call__.1} parent=51 // pred_check_branch
        %1095 = sbr.rel (%p1093) target = $region56
      $region55: #{a_call__.1} parent=51 // pred_region
        %p1096 = scmp.lt.s32.totalorder %s25, 1
        %s1097 = scalar_select %p1096, %s25, 1
        %p1098 = scmp.lt.s32.totalorder %s26, 3
        %s1099 = scalar_select %p1098, %s26, 3
        %p1100 = scmp.lt.s32.totalorder %s27, 0
        %s1101 = scalar_select %p1100, %s27, 0
        %s1102 = sadd.s32 %s1101, %s1099
        %s1103 = smul.addr %s1097, 4
        %s1104 = sadd.s32 %s1102, %s1103
        %s1105 = smul.addr %s1104, 8
        %s1106 = scalar_lea.vmem %s4, %s1105
      $region56: #{a_call__.1} parent=51 // pred_fallthru
        _
    $region52: #{a_call__.1} parent=5 // pred_fallthru
      _
  $region6: #{a_call__.1} parent=0 // loop_footer
    %s14 = sadd.s32 1, %s10
  $region7: #{a_call__.1} parent=0 // loop_footer_branch
    %9 = sbr.rel target = $region3
  $region8: #{a_call__.1} parent=0 // loop_exit
    _

</llo_original>
